<compile_context>
chip_gen: v7x
topology: tpu7x:2x2x1
jax: 0.10.0
libtpu: 0.0.40
codegen_flags: <defaults>
</compile_context>

<pallas_src>
import functools
import math

import jax
import jax.numpy as jnp
from jax.experimental import pallas as pl
from jax.experimental.pallas import tpu as pltpu


# ------------------------------- hw helpers -------------------------------- #
_DEVICE_KIND_CACHE = None
_VMEM_LIMIT_CACHE = None


def _device_kind():
    global _DEVICE_KIND_CACHE
    if _DEVICE_KIND_CACHE is None:
        try:
            _DEVICE_KIND_CACHE = jax.devices()[0].device_kind.lower()
        except Exception:
            _DEVICE_KIND_CACHE = ""
    return _DEVICE_KIND_CACHE


def _vmem_limit_bytes():
    """~2/3 of physical VMEM: headroom for double-buffering, per perf review."""
    global _VMEM_LIMIT_CACHE
    if _VMEM_LIMIT_CACHE is None:
        cap = 64 * 1024 * 1024  # conservative default: v7x physical per-TC VMEM
        try:
            info = pltpu.get_tpu_info()
            cap = int(getattr(info, "vmem_capacity_bytes", cap))
        except Exception:
            pass
        _VMEM_LIMIT_CACHE = int(cap * 2 // 3)
    return _VMEM_LIMIT_CACHE


# ------------------------------ tile helpers ------------------------------- #
def _pick_tile(dim, target, aligns=(128, 8)):
    """Largest t <= target with dim % t == 0 and t % align == 0 (aligns tried in
    order).  Falls back to the full extent, which is always a legal block size."""
    if dim <= target:
        return dim
    for align in aligns:
        start = (target // align) * align
        for t in range(start, 0, -align):
            if dim % t == 0:
                return t
    return dim


# ------------------------------ linear kernel ------------------------------ #
def _linear_kernel(x_ref, w_ref, b_ref, o_ref, acc_ref):
    k = pl.program_id(2)

    @pl.when(k == 0)
    def _():
        acc_ref[...] = jnp.zeros_like(acc_ref)

    acc_ref[...] += jnp.dot(x_ref[...], w_ref[...],
                            preferred_element_type=jnp.float32)

    @pl.when(k == pl.num_programs(2) - 1)
    def _():
        o_ref[...] = (acc_ref[...] + b_ref[...].astype(jnp.float32)).astype(o_ref.dtype)


def linear(x, w, b, *, tm_target=None, tn_target=None, tk_target=512):
    """x: (M, K) @ w: (K, N) + b: (N,) -> (M, N), K-tiled with f32 accumulation."""
    M, K = x.shape
    N = w.shape[1]
    kind = _device_kind()
    if tn_target is None:
        # v5e MXU is 4x128x128: 128-wide N tiles map exactly; 256+ suits v6e/v7x.
        tn_target = 128 if "v5" in kind else 256
    if tm_target is None:
        tm_target = 256 if "v5" in kind else 512

    tm = _pick_tile(M, tm_target, aligns=(8,))
    tn = _pick_tile(N, tn_target, aligns=(128,))   # last dim: mult of 128 or full N
    tk = _pick_tile(K, tk_target, aligns=(128,))   # last dim of x block
    grid = (M // tm, N // tn, K // tk)

    return pl.pallas_call(
        _linear_kernel,
        out_shape=jax.ShapeDtypeStruct((M, N), x.dtype),
        grid=grid,
        in_specs=[
            pl.BlockSpec((tm, tk), lambda i, j, k: (i, k)),
            pl.BlockSpec((tk, tn), lambda i, j, k: (k, j)),
            pl.BlockSpec((1, tn), lambda i, j, k: (0, j)),
        ],
        out_specs=pl.BlockSpec((tm, tn), lambda i, j, k: (i, j)),
        scratch_shapes=[pltpu.VMEM((tm, tn), jnp.float32)],
        compiler_params=pltpu.CompilerParams(
            dimension_semantics=("parallel", "parallel", "arbitrary"),
            vmem_limit_bytes=_vmem_limit_bytes(),
        ),
    )(x, w, b.reshape(1, N))


# ----------------------- flash attention (fused heads) --------------------- #
def _mha_flash_kernel(q_ref, k_ref, v_ref, o_ref, m_ref, l_ref, acc_ref, *, G, d_k):
    # q_ref/o_ref: (1, tq, G*d_k); k_ref/v_ref: (1, tkv, G*d_k) -- direct slices
    # of the (B, S, D) tensors; head split/merge is expressed by the BlockSpecs.
    # 1/sqrt(d_k) is already folded into the Q projection parameters.
    ki = pl.program_id(3)
    tq = q_ref.shape[1]
    tkv = k_ref.shape[1]

    @pl.when(ki == 0)
    def _():
        m_ref[...] = jnp.full(m_ref.shape, -jnp.inf, dtype=m_ref.dtype)
        l_ref[...] = jnp.zeros_like(l_ref)
        acc_ref[...] = jnp.zeros_like(acc_ref)

    # One relayout per grid step (not per head): (t, G*d_k) -> (G, t, d_k),
    # then a single head-batched dot_general for scores and for P@V.
    q_g = q_ref[0].reshape(tq, G, d_k).transpose(1, 0, 2)     # (G, tq, d_k)
    k_g = k_ref[0].reshape(tkv, G, d_k).transpose(1, 0, 2)    # (G, tkv, d_k)
    v_g = v_ref[0].reshape(tkv, G, d_k).transpose(1, 0, 2)    # (G, tkv, d_k)

    s = jnp.einsum("gqd,gkd->gqk", q_g, k_g,
                   preferred_element_type=jnp.float32)        # (G, tq, tkv)
    # TODO(synk): optional `mask` (masked_fill(mask == 0, -1e9)) not wired; the
    # module is exercised with mask=None.

    m_prev = m_ref[...]                                        # (G, tq, 1)
    m_new = jnp.maximum(m_prev, jnp.max(s, axis=-1, keepdims=True))
    alpha = jnp.exp(m_prev - m_new)
    p = jnp.exp(s - m_new)
    l_ref[...] = alpha * l_ref[...] + jnp.sum(p, axis=-1, keepdims=True)
    acc_ref[...] = alpha * acc_ref[...] + jnp.einsum(
        "gqk,gkd->gqd", p.astype(v_g.dtype), v_g,
        preferred_element_type=jnp.float32)
    m_ref[...] = m_new

    @pl.when(ki == pl.num_programs(3) - 1)
    def _():
        out = acc_ref[...] / l_ref[...]        # exact recip; once per q tile
        o_ref[0] = out.transpose(1, 0, 2).reshape(tq, G * d_k).astype(o_ref.dtype)


def flash_mha_attention(q, k, v, num_heads, *, q_tile=None, kv_tile=None):
    """Scaled-dot-product attention over all heads, fused into the (B, S, D) layout.

    q, k, v: (B, S, D) projection outputs (scale already folded into q's
    projection).  Returns (B, S, D) with heads already merged.
    """
    B, S, D = q.shape
    H = num_heads
    assert D % H == 0, (D, H)
    d_k = D // H

    # Group heads so each block's last dim is a multiple of 128 lanes; fall back
    # to full d_model (gd == D) only when no such grouping exists.
    G = None
    for cand in range(H, 0, -1):
        if H % cand == 0 and (cand * d_k) % 128 == 0:
            G = cand
            break
    if G is None:
        G = H
    gd = G * d_k
    n_groups = H // G

    kind = _device_kind()
    if q_tile is None:
        # Bigger tq on v6e/v7x halves K/V re-streaming ((S/tq)*S*gd HBM reads).
        q_tile = 256 if "v5" in kind else 512
    if kv_tile is None:
        kv_tile = 512

    itemsize = jnp.dtype(q.dtype).itemsize
    tq = _pick_tile(S, q_tile)      # prefers 128-aligned, then 8-aligned
    tkv = _pick_tile(S, kv_tile)    # 128-aligned tkv => dense score / MXU depth

    # VMEM budget: 2x double-buffered (q + out) + (k + v) blocks + f32 scratch.
    budget = max(4 << 20, int(_vmem_limit_bytes() * 0.6))

    def _usage(tq_, tkv_):
        blocks = 2 * (2 * tq_ * gd + 2 * tkv_ * gd) * itemsize
        scratch = G * tq_ * (d_k + 2) * 4
        return blocks + scratch

    for _ in range(32):
        if _usage(tq, tkv) <= budget:
            break
        if tkv >= tq and tkv > 8:
            cand = _pick_tile(S, max(8, tkv // 2))
            if cand < tkv:
                tkv = cand
                continue
        if tq > 8:
            cand = _pick_tile(S, max(8, tq // 2))
            if cand < tq:
                tq = cand
                continue
        break

    # Grid: batch / head-group / q tiles parallel (megacore), KV reduction innermost.
    grid = (B, n_groups, S // tq, S // tkv)

    kernel = functools.partial(_mha_flash_kernel, G=G, d_k=d_k)
    return pl.pallas_call(
        kernel,
        out_shape=jax.ShapeDtypeStruct((B, S, D), q.dtype),
        grid=grid,
        in_specs=[
            pl.BlockSpec((1, tq, gd), lambda b, g, qi, ki: (b, qi, g)),
            pl.BlockSpec((1, tkv, gd), lambda b, g, qi, ki: (b, ki, g)),
            pl.BlockSpec((1, tkv, gd), lambda b, g, qi, ki: (b, ki, g)),
        ],
        out_specs=pl.BlockSpec((1, tq, gd), lambda b, g, qi, ki: (b, qi, g)),
        scratch_shapes=[
            pltpu.VMEM((G, tq, 1), jnp.float32),     # running max
            pltpu.VMEM((G, tq, 1), jnp.float32),     # running denominator
            pltpu.VMEM((G, tq, d_k), jnp.float32),   # output accumulator
        ],
        compiler_params=pltpu.CompilerParams(
            dimension_semantics=("parallel", "parallel", "parallel", "arbitrary"),
            vmem_limit_bytes=_vmem_limit_bytes(),
        ),
    )(q, k, v)


# ------------------------------ module wrapper ------------------------------ #
def init_mha_params(key, d_model):
    """Deterministic synthetic parameters (uniform +-1/sqrt(d_model), like nn.Linear)."""
    bound = 1.0 / math.sqrt(d_model)
    keys = jax.random.split(key, 8)
    names = ["wq", "wk", "wv", "wo"]
    params = {}
    for i, n in enumerate(names):
        params[n] = jax.random.uniform(
            keys[2 * i], (d_model, d_model), jnp.float32, -bound, bound
        )
        params["b" + n[1]] = jax.random.uniform(
            keys[2 * i + 1], (d_model,), jnp.float32, -bound, bound
        )
    return params


def multi_head_attention(q, k, v, params, num_heads, mask=None):
    """Equivalent of MultiHeadAttention.forward(q, k, v, mask=None)."""
    # TODO(synk): mask path (masked_fill(mask == 0, -1e9)) not implemented.
    assert mask is None
    B, S, D = q.shape
    assert D % num_heads == 0
    d_k = D // num_heads
    scale = 1.0 / math.sqrt(d_k)

    # Fold 1/sqrt(d_k) into the Q projection parameters (once, on small params):
    # removes the per-kv-step scale multiply from the attention hot loop.
    wq = params["wq"] * scale
    bq = params["bq"] * scale

    if (q is k) and (k is v):
        # Self-attention: fuse the three projections into one (D, 3D) GEMM.
        w_qkv = jnp.concatenate([wq, params["wk"], params["wv"]], axis=1)
        b_qkv = jnp.concatenate([bq, params["bk"], params["bv"]])
        qkv = linear(q.reshape(B * S, D), w_qkv, b_qkv)       # (B*S, 3D)
        Q = qkv[:, :D].reshape(B, S, D)
        K = qkv[:, D:2 * D].reshape(B, S, D)
        V = qkv[:, 2 * D:].reshape(B, S, D)
    else:
        Q = linear(q.reshape(B * S, D), wq, bq).reshape(B, S, D)
        K = linear(k.reshape(B * S, D), params["wk"], params["bk"]).reshape(B, S, D)
        V = linear(v.reshape(B * S, D), params["wv"], params["bv"]).reshape(B, S, D)

    # Head split/merge lives inside the attention BlockSpecs: no transposes or
    # (B, H, S, d_k) intermediates in HBM.
    attn = flash_mha_attention(Q, K, V, num_heads)

    out = linear(attn.reshape(B * S, D), params["wo"], params["bo"]).reshape(B, S, D)
    return out


# ----------------------------------- main ----------------------------------- #
if __name__ == "__main__":
    def ref_forward(q, k, v, params, num_heads):
        B, S, D = q.shape
        d_k = D // num_heads
        Q = q @ params["wq"] + params["bq"]
        K = k @ params["wk"] + params["bk"]
        V = v @ params["wv"] + params["bv"]

        def split(x):
            return x.reshape(B, -1, num_heads, d_k).transpose(0, 2, 1, 3)

        Qh, Kh, Vh = split(Q), split(K), split(V)
        scores = jnp.einsum("bhqd,bhkd->bhqk", Qh, Kh) / math.sqrt(d_k)
        w = jax.nn.softmax(scores, axis=-1)
        o = jnp.einsum("bhqk,bhkd->bhqd", w, Vh)
        o = o.transpose(0, 2, 1, 3).reshape(B, -1, D)
        return o @ params["wo"] + params["bo"]

    key = jax.random.PRNGKey(0)

    # Test 1: self-attention (exercises the fused QKV GEMM path).
    B, S, D, H = 2, 8, 32, 4
    k1, k2, key = jax.random.split(key, 3)
    x = jax.random.normal(k1, (B, S, D), jnp.float32)
    params = init_mha_params(k2, D)
    out = jax.block_until_ready(multi_head_attention(x, x, x, params, num_heads=H))
    assert out.shape == (B, S, D), out.shape
    assert out.dtype == jnp.float32, out.dtype
    ref = ref_forward(x, x, x, params, H)
    err1 = float(jnp.abs(out - ref).max())
    assert jnp.allclose(out, ref, atol=1e-3, rtol=1e-3), err1

    # Test 2: cross-attention (separate Q/K/V projections), larger d_model.
    B2, S2, D2, H2 = 2, 16, 64, 8
    kq, kk, kv, kp = jax.random.split(key, 4)
    q = jax.random.normal(kq, (B2, S2, D2), jnp.float32)
    k = jax.random.normal(kk, (B2, S2, D2), jnp.float32)
    v = jax.random.normal(kv, (B2, S2, D2), jnp.float32)
    params2 = init_mha_params(kp, D2)
    out2 = jax.block_until_ready(multi_head_attention(q, k, v, params2, num_heads=H2))
    assert out2.shape == (B2, S2, D2), out2.shape
    ref2 = ref_forward(q, k, v, params2, H2)
    err2 = float(jnp.abs(out2 - ref2).max())
    assert jnp.allclose(out2, ref2, atol=1e-3, rtol=1e-3), err2

    print("KERNEL_OK")
</pallas_src>

<mosaic_0001>
module attributes {stable_mosaic.version = 11 : i64} {
  func.func @_linear_kernel(%arg0: i32, %arg1: i32, %arg2: i32, %arg3: memref<16x32xf32, #tpu.memory_space<vmem>>, %arg4: memref<32x96xf32, #tpu.memory_space<vmem>>, %arg5: memref<1x96xf32, #tpu.memory_space<vmem>>, %arg6: memref<16x96xf32, #tpu.memory_space<vmem>>, %arg7: memref<16x96xf32, #tpu.memory_space<vmem>>) attributes {dimension_semantics = [#tpu.dimension_semantics<parallel>, #tpu.dimension_semantics<parallel>, #tpu.dimension_semantics<arbitrary>], iteration_bounds = array<i64: 1, 1, 1>, scalar_prefetch = 0 : i64, scratch_operands = 1 : i64, tpu.core_type = #tpu.core_type<tc>, window_params = [{transform_indices = @transform_0, window_bounds = array<i64: 16, 32>}, {transform_indices = @transform_1, window_bounds = array<i64: 32, 96>}, {transform_indices = @transform_2, window_bounds = array<i64: 1, 96>}, {transform_indices = @transform_3, window_bounds = array<i64: 16, 96>}]} {
    %c0_i32 = arith.constant 0 : i32
    %0 = arith.cmpi eq, %arg2, %c0_i32 : i32
    %1 = arith.extui %0 : i1 to i32
    %c0_i32_0 = arith.constant 0 : i32
    %2 = arith.cmpi ne, %1, %c0_i32_0 : i32
    scf.if %2 {
      %cst_10 = arith.constant 0.000000e+00 : f32
      %12 = vector.broadcast %cst_10 : f32 to vector<16x96xf32>
      %c0_11 = arith.constant 0 : index
      %c0_12 = arith.constant 0 : index
      %13 = vector.load %arg7[%c0_11, %c0_12] : memref<16x96xf32, #tpu.memory_space<vmem>>, vector<16x96xf32>
      tpu.vector_store %arg7[%c0_11, %c0_12], %12 {strides = array<i32>} : memref<16x96xf32, #tpu.memory_space<vmem>>, vector<16x96xf32>,
    } else {
    }
    %c0 = arith.constant 0 : index
    %c0_1 = arith.constant 0 : index
    %3 = vector.load %arg7[%c0, %c0_1] : memref<16x96xf32, #tpu.memory_space<vmem>>, vector<16x96xf32>
    %c0_2 = arith.constant 0 : index
    %c0_3 = arith.constant 0 : index
    %4 = vector.load %arg3[%c0_2, %c0_3] : memref<16x32xf32, #tpu.memory_space<vmem>>, vector<16x32xf32>
    %c0_4 = arith.constant 0 : index
    %c0_5 = arith.constant 0 : index
    %5 = vector.load %arg4[%c0_4, %c0_5] : memref<32x96xf32, #tpu.memory_space<vmem>>, vector<32x96xf32>
    %cst = arith.constant dense<0.000000e+00> : vector<16x96xf32>
    %6 = tpu.matmul %4, %5, %cst {dimension_numbers = #tpu.dot_dimension_numbers<[1], [0], [0], [1], [0, 0, 1, 1], [], []>} : vector<16x32xf32>, vector<32x96xf32>, vector<16x96xf32> -> vector<16x96xf32>
    %7 = arith.addf %3, %6 : vector<16x96xf32>
    %c0_6 = arith.constant 0 : index
    %c0_7 = arith.constant 0 : index
    %8 = vector.load %arg7[%c0_6, %c0_7] : memref<16x96xf32, #tpu.memory_space<vmem>>, vector<16x96xf32>
    tpu.vector_store %arg7[%c0_6, %c0_7], %7 {strides = array<i32>} : memref<16x96xf32, #tpu.memory_space<vmem>>, vector<16x96xf32>,
    %c0_i32_8 = arith.constant 0 : i32
    %9 = arith.cmpi eq, %arg2, %c0_i32_8 : i32
    %10 = arith.extui %9 : i1 to i32
    %c0_i32_9 = arith.constant 0 : i32
    %11 = arith.cmpi ne, %10, %c0_i32_9 : i32
    scf.if %11 {
      %c0_10 = arith.constant 0 : index
      %c0_11 = arith.constant 0 : index
      %12 = vector.load %arg7[%c0_10, %c0_11] : memref<16x96xf32, #tpu.memory_space<vmem>>, vector<16x96xf32>
      %c0_12 = arith.constant 0 : index
      %c0_13 = arith.constant 0 : index
      %13 = vector.load %arg5[%c0_12, %c0_13] : memref<1x96xf32, #tpu.memory_space<vmem>>, vector<1x96xf32>
      %14 = vector.broadcast %13 : vector<1x96xf32> to vector<16x96xf32>
      %15 = arith.addf %12, %14 : vector<16x96xf32>
      %c0_14 = arith.constant 0 : index
      %c0_15 = arith.constant 0 : index
      %16 = vector.load %arg6[%c0_14, %c0_15] : memref<16x96xf32, #tpu.memory_space<vmem>>, vector<16x96xf32>
      tpu.vector_store %arg6[%c0_14, %c0_15], %15 {strides = array<i32>} : memref<16x96xf32, #tpu.memory_space<vmem>>, vector<16x96xf32>,
    } else {
    }
    return
  }
  func.func @transform_0(%arg0: i32, %arg1: i32, %arg2: i32) -> (i32, i32) {
    %c0_i32 = arith.constant 0 : i32
    return %arg0, %arg2 : i32, i32
  }
  func.func @transform_1(%arg0: i32, %arg1: i32, %arg2: i32) -> (i32, i32) {
    %c0_i32 = arith.constant 0 : i32
    return %arg2, %arg1 : i32, i32
  }
  func.func @transform_2(%arg0: i32, %arg1: i32, %arg2: i32) -> (i32, i32) {
    %c0_i32 = arith.constant 0 : i32
    %c0_i32_0 = arith.constant 0 : i32
    return %c0_i32, %arg1 : i32, i32
  }
  func.func @transform_3(%arg0: i32, %arg1: i32, %arg2: i32) -> (i32, i32) {
    %c0_i32 = arith.constant 0 : i32
    return %arg0, %arg1 : i32, i32
  }
}

</mosaic_0001>

<llo_original>
// kernel: tpu_custom_call.1
$region0: #{tpu_custom_call.1}
  #allocation0 [shape = 'u32[]', space=smem, size = 0x4, offset = 0x4, fixed_abs, tag = 'smem constant byte address 0x4 - core index']
  #allocation1 [shape = 'u32[144,128]{1,0:T(1,128)}', space=vmem, size = 0x12000, scoped, tag = 'internal scratch']
  #allocation2 [shape = 'f32[16,96]{1,0:T(8,128)}', space=vmem, size = 0x2000, scoped, tag = 'scratch operand']
  %s0 = inlined_call_operand.hbm [shape: f32[16,32], index: 0, kind: input, shape index: {}]
  %s1 = inlined_call_operand.hbm [shape: f32[32,96], index: 1, kind: input, shape index: {}]
  %s2 = inlined_call_operand.vmem [shape: f32[1,96], index: 2, kind: input, shape index: {}]
  %s3 = inlined_call_operand.hbm [shape: f32[16,96], index: 3, kind: output, shape index: {}]
  %s4 = sld [smem:[#allocation0]]
  $region38: #{tpu_custom_call.1} parent=0
    _
  %s6 = ssub.s32 1, %s4
  %s7 = scalar_select 0, %s6, %s4
  $region1: #{tpu_custom_call.1} parent=0
    #allocation3 [shape = 'u8[8192]{0}', space=vmem, size = 0x2000, scoped, tag = 'input window, operand 0, single buffered']
    #allocation4 [shape = 's32[1]{0}', space=sflag, size = 0x4, scoped, tag = 'scoped memory for tpu_custom_call.1']
    #allocation5 [shape = 's32[1]{0}', space=sflag, size = 0x4, scoped, tag = 'scoped memory for tpu_custom_call.1']
    #allocation6 [shape = 'u8[16384]{0}', space=vmem, size = 0x4000, scoped, tag = 'input window, operand 1, single buffered']
    #allocation7 [shape = 's32[1]{0}', space=sflag, size = 0x4, scoped, tag = 'scoped memory for tpu_custom_call.1']
    #allocation8 [shape = 'u8[8192]{0}', space=vmem, size = 0x2000, scoped, tag = 'output window, operand 0, single buffered']
    %8 = vsyncpa [#allocation4], 0
    %9 = vsyncpa [#allocation7], 0
    %10 = vsyncpa [#allocation5], 0
    // Predicated region
    $region2: #{tpu_custom_call.1} parent=1 // pred_check
      _
    $region3: #{tpu_custom_call.1} parent=1 // pred_check_branch
      %12 = sbr.rel (0) target = $region5
    $region4: #{tpu_custom_call.1} parent=1 // pred_region
      %s14 = ssub.s32 256, 256
      %15 = vsyncadd [#allocation4], %s14
      %s16 = sshll.u32 [#allocation3], 4
      %s17 = int_to_ptr.vmem [resolvable:$true] %s16
      %22 = dma.hbm_to_vmem [thread:$0]  %s0, 256, %s17, [#allocation4], 128, 128, 8
    $region5: #{tpu_custom_call.1} parent=1 // pred_fallthru
      _
    // Predicated region
    $region6: #{tpu_custom_call.1} parent=1 // pred_check
      _
    $region7: #{tpu_custom_call.1} parent=1 // pred_check_branch
      %24 = sbr.rel (0) target = $region9
    $region8: #{tpu_custom_call.1} parent=1 // pred_region
      %s26 = ssub.s32 512, 512
      %27 = vsyncadd [#allocation7], %s26
      %s28 = sshll.u32 [#allocation6], 4
      %s29 = int_to_ptr.vmem [resolvable:$true] %s28
      %34 = dma.hbm_to_vmem [thread:$0]  %s1, 512, %s29, [#allocation7], 128, 128, 8
    $region9: #{tpu_custom_call.1} parent=1 // pred_fallthru
      _
    // Predicated region
    $region10: #{tpu_custom_call.1} parent=1 // pred_check
      _
    $region11: #{tpu_custom_call.1} parent=1 // pred_check_branch
      %36 = sbr.rel (0) target = $region13
    $region12: #{tpu_custom_call.1} parent=1 // pred_region
      _
    $region13: #{tpu_custom_call.1} parent=1 // pred_fallthru
      _
    // Predicated region
    $region14: #{tpu_custom_call.1} parent=1 // pred_check
      _
    $region15: #{tpu_custom_call.1} parent=1 // pred_check_branch
      %38 = sbr.rel (0) target = $region17
    $region16: #{tpu_custom_call.1} parent=1 // pred_region
      %39 = dma.done [#allocation4], 256
    $region17: #{tpu_custom_call.1} parent=1 // pred_fallthru
      _
    // Predicated region
    $region18: #{tpu_custom_call.1} parent=1 // pred_check
      _
    $region19: #{tpu_custom_call.1} parent=1 // pred_check_branch
      %41 = sbr.rel (0) target = $region21
    $region20: #{tpu_custom_call.1} parent=1 // pred_region
      %42 = dma.done [#allocation7], 512
    $region21: #{tpu_custom_call.1} parent=1 // pred_fallthru
      _
    %p43 = scmp.eq.s32.totalorder 0, 0
    // Predicated region
    $region22: #{tpu_custom_call.1} parent=1 // pred_check
      %p44 = pneg %p43
    $region23: #{tpu_custom_call.1} parent=1 // pred_check_branch
      %46 = sbr.rel (%p44) target = $region25
    $region24: #{tpu_custom_call.1} parent=1 // pred_region
      %vm47 = vcmask 785408
      %48 = vst.msk [vmem:[#allocation2] sm:$0xff] %vm47, 0.0
      %49 = vst.msk [vmem:[#allocation2 + $0x8] sm:$0xff] %vm47, 0.0
    $region25: #{tpu_custom_call.1} parent=1 // pred_fallthru
      _
    %v50 = vld [vmem:[#allocation2] sm:$0xff]
    %v51 = vld [vmem:[#allocation2 + $0x8] sm:$0xff]
    %v52 = vld [vmem:[#allocation3] sm:$0xff]
    %v53 = vld [vmem:[#allocation3 + $0x8] sm:$0xff]
    %v54 = vld [vmem:[#allocation6] sm:$0xff]
    %v55 = vld [vmem:[#allocation6 + $0x8] sm:$0xff]
    %v56 = vld [vmem:[#allocation6 + $0x10] sm:$0xff]
    %v57 = vld [vmem:[#allocation6 + $0x18] sm:$0xff]
    %vm58 = vcmask 261120
    %v60 = vsel %vm58, %v52, 0
    %v63 = vsel %vm58, %v53, 0
    %65 = vmatprep.subr.mxu0 0.0
    %66 = vmatpush1.msra.mxu0 %v54
    %67 = vmatprep.subr.mxu0 0.0
    %68 = vmatpush1.msra.mxu0 %v55
    %69 = vmatprep.subr.mxu0 0.0
    %70 = vmatpush1.msra.mxu0 %v56
    %71 = vmatprep.subr.mxu0 0.0
    %72 = vmatpush1.msra.mxu0 %v57
    %73 = vmatprep.subr.mxu0 0.0
    %74 = vmatpush1.msra.mxu0 0.0
    %75 = vmatprep.subr.mxu0 0.0
    %76 = vmatpush1.msra.mxu0 0.0
    %77 = vmatprep.subr.mxu0 0.0
    %78 = vmatpush1.msra.mxu0 0.0
    %79 = vmatprep.subr.mxu0 0.0
    %80 = vmatpush1.msra.mxu0 0.0
    %81 = vmatprep.subr.mxu0 0.0
    %82 = vmatpush1.msra.mxu0 0.0
    %83 = vmatprep.subr.mxu0 0.0
    %84 = vmatpush1.msra.mxu0 0.0
    %85 = vmatprep.subr.mxu0 0.0
    %86 = vmatpush1.msra.mxu0 0.0
    %87 = vmatprep.subr.mxu0 0.0
    %88 = vmatpush1.msra.mxu0 0.0
    %89 = vmatprep.subr.mxu0 0.0
    %90 = vmatpush1.msra.mxu0 0.0
    %91 = vmatprep.subr.mxu0 0.0
    %92 = vmatpush1.msra.mxu0 0.0
    %93 = vmatprep.subr.mxu0 0.0
    %94 = vmatpush1.msra.mxu0 0.0
    %95 = vmatprep.subr.mxu0 0.0
    %96 = vmatpush1.msra.mxu0 0.0
    %97 = vmatprep.subr.mxu0 0.0
    %98 = vmatpush1.msra.mxu0 0.0
    %99 = vmatprep.subr.mxu0 0.0
    %100 = vmatpush1.msra.mxu0 0.0
    %101 = vmatprep.subr.mxu0 0.0
    %102 = vmatpush1.msra.mxu0 0.0
    %103 = vmatprep.subr.mxu0 0.0
    %104 = vmatpush1.msra.mxu0 0.0
    %105 = vmatprep.subr.mxu0 0.0
    %106 = vmatpush1.msra.mxu0 0.0
    %107 = vmatprep.subr.mxu0 0.0
    %108 = vmatpush1.msra.mxu0 0.0
    %109 = vmatprep.subr.mxu0 0.0
    %110 = vmatpush1.msra.mxu0 0.0
    %111 = vmatprep.subr.mxu0 0.0
    %112 = vmatpush1.msra.mxu0 0.0
    %113 = vmatprep.subr.mxu0 0.0
    %114 = vmatpush1.msra.mxu0 0.0
    %115 = vmatprep.subr.mxu0 0.0
    %116 = vmatpush1.msra.mxu0 0.0
    %117 = vmatprep.subr.mxu0 0.0
    %118 = vmatpush1.msra.mxu0 0.0
    %119 = vmatprep.subr.mxu0 0.0
    %120 = vmatpush1.msra.mxu0 0.0
    %121 = vmatprep.subr.mxu0 0.0
    %122 = vmatpush1.msra.mxu0 0.0
    %123 = vmatprep.subr.mxu0 0.0
    %124 = vmatpush1.msra.mxu0 0.0
    %125 = vmatprep.subr.mxu0 0.0
    %126 = vmatpush1.msra.mxu0 0.0
    %127 = vmatprep.subr.mxu0 0.0
    %128 = vmatpush1.msra.mxu0 0.0
    %129 = vmatprep.mubr.f32.mxu0 0.0
    %130 = vmatmul.mubr.f32.gmra.mrb[0].mxu0 %v60
    %v131 = vpop.f32.mrb[0].mxu0
    %v132 = vadd.f32 0.0, %v131
    %v133 = vpop.f32.mrb[0].mxu0
    %134 = vmatprep.mubr.f32.mxu0 0.0
    %135 = vmatmul.mubr.f32.gmra.mrb[0].mxu0 %v63
    %v136 = vpop.f32.mrb[0].mxu0
    %v137 = vadd.f32 0.0, %v136
    %v138 = vpop.f32.mrb[0].mxu0
    %139 = vdwg.mxu0
    %v140 = vadd.f32 %v50, %v132
    %v141 = vadd.f32 %v51, %v137
    %vm142 = vcmask 785408
    %143 = vst.msk [vmem:[#allocation2] sm:$0xff] %vm142, %v140
    %144 = vst.msk [vmem:[#allocation2 + $0x8] sm:$0xff] %vm142, %v141
    // Predicated region
    $region26: #{tpu_custom_call.1} parent=1 // pred_check
      %p145 = pneg %p43
    $region27: #{tpu_custom_call.1} parent=1 // pred_check_branch
      %147 = sbr.rel (%p145) target = $region29
    $region28: #{tpu_custom_call.1} parent=1 // pred_region
      %v148 = vld [vmem:[#allocation2] sm:$0xff]
      %v149 = vld [vmem:[#allocation2 + $0x8] sm:$0xff]
      %v150 = vld [vmem:[%s2] sm:$0x1]
      %v152 = vlaneseq
      %v153 = vshrl.u32 %v152, 7
      %v154 = vsub.s32 0, %v153
      %v155 = vrot.slane %v150, %v154
      %v157 = vadd.f32 %v148, %v155
      %v158 = vadd.f32 %v149, %v155
      %159 = vst.msk [vmem:[#allocation8] sm:$0xff] %vm142, %v157
      %160 = vst.msk [vmem:[#allocation8 + $0x8] sm:$0xff] %vm142, %v158
    $region29: #{tpu_custom_call.1} parent=1 // pred_fallthru
      _
    // Predicated region
    $region30: #{tpu_custom_call.1} parent=1 // pred_check
      _
    $region31: #{tpu_custom_call.1} parent=1 // pred_check_branch
      %162 = sbr.rel (0) target = $region33
    $region32: #{tpu_custom_call.1} parent=1 // pred_region
      %s164 = ssub.s32 256, 256
      %165 = vsyncadd [#allocation5], %s164
      %s166 = sshll.u32 [#allocation8], 4
      %s167 = int_to_ptr.vmem [resolvable:$true] %s166
      %172 = dma.vmem_to_hbm [thread:$0]  %s167, 256, %s3, [#allocation5], 128, 128, 8
    $region33: #{tpu_custom_call.1} parent=1 // pred_fallthru
      _
    // Predicated region
    $region34: #{tpu_custom_call.1} parent=1 // pred_check
      _
    $region35: #{tpu_custom_call.1} parent=1 // pred_check_branch
      %174 = sbr.rel (0) target = $region37
    $region36: #{tpu_custom_call.1} parent=1 // pred_region
      %175 = dma.done [#allocation5], 256
    $region37: #{tpu_custom_call.1} parent=1 // pred_fallthru
      _
    %176 = vsyncpa [#allocation4], 1
    %177 = vsyncpa [#allocation7], 1
    %178 = vsyncpa [#allocation5], 1

</llo_original>
